<compile_context>
chip_gen: v7x
topology: tpu7x:2x2x1
jax: 0.10.0
libtpu: 0.0.40
codegen_flags: <defaults>
</compile_context>

<pallas_src>
import functools

import jax
import jax.numpy as jnp
from jax.experimental import pallas as pl
from jax.experimental.pallas import tpu as pltpu


def _round_up(x, m):
    return ((x + m - 1) // m) * m


def _choose_tile(size, align, max_tile):
    """Largest (align-multiple) tile <= max_tile keeping pad waste <= ~12.5%."""
    size_a = _round_up(max(size, 1), align)
    if size_a <= max_tile:
        return size_a                      # single block, only alignment padding
    for t in range(max_tile, align - 1, -align):
        padded = _round_up(size_a, t)
        if (padded - size_a) * 8 <= size_a:    # waste <= 12.5%
            return t
    return align                            # always exact (waste 0)


def _linear_kernel(x_ref, w_ref, b_ref, o_ref):
    """One (TB, TN) output tile; reduction over the k grid axis.

    Output block is revisited across k, so o_ref itself is the accumulator:
    init with bias at k == 0, then accumulate MXU partial products.
    """
    k = pl.program_id(2)

    @pl.when(k == 0)
    def _():
        o_ref[...] = jnp.broadcast_to(b_ref[...], o_ref.shape).astype(o_ref.dtype)

    o_ref[...] += jnp.dot(
        x_ref[...], w_ref[...], preferred_element_type=jnp.float32
    )


@functools.partial(jax.jit, static_argnames=("tb", "tn", "tk", "n_out"))
def _linear_pallas_padded(x, w_p, b_p, *, tb, tn, tk, n_out):
    """y = x @ w_p + b_p (pre-padded weight), pad/slice fused with the kernel."""
    B, K = x.shape
    Kp, Np = w_p.shape

    Bp = _round_up(B, tb)
    x_p = jnp.pad(x, ((0, Bp - B), (0, Kp - K)))   # zero-pad: safe for contraction

    grid = (Bp // tb, Np // tn, Kp // tk)

    out = pl.pallas_call(
        _linear_kernel,
        out_shape=jax.ShapeDtypeStruct((Bp, Np), jnp.float32),
        grid_spec=pltpu.PrefetchScalarGridSpec(
            num_scalar_prefetch=0,
            grid=grid,
            in_specs=[
                pl.BlockSpec((tb, tk), lambda i, j, k: (i, k)),   # x tile
                pl.BlockSpec((tk, tn), lambda i, j, k: (k, j)),   # cached W^T tile
                pl.BlockSpec((1, tn), lambda i, j, k: (0, j)),    # bias tile
            ],
            out_specs=pl.BlockSpec((tb, tn), lambda i, j, k: (i, j)),
        ),
        compiler_params=pltpu.CompilerParams(
            dimension_semantics=("parallel", "parallel", "arbitrary"),
            vmem_limit_bytes=32 * 1024 * 1024,   # footprint <= ~10 MiB, fits v5e/v6e/v7x
        ),
    )(x_p, w_p, b_p)

    return out[:B, :n_out]


class ParamProviderPallas:
    """Pallas equivalent of ParamProvider: forward == Linear(input_size, output_size).

    All ParamType branches in the reference forward are `pass`, so param_type
    only tags the provider; it does not change the computation.
    """

    # Tile caps (f32): 512x1024 x, 1024x512 W^T, 512x512 out ~= 10 MiB double-buffered.
    _TB_MAX = 512
    _TN_MAX = 512
    _TK_MAX = 1024

    def __init__(self, param_type, weight, bias):
        self.param_type = param_type
        self.output_size, self.input_size = weight.shape

        # Per-weight tiles chosen once (pad waste bounded).
        self.tn = _choose_tile(self.output_size, 128, self._TN_MAX)
        self.tk = _choose_tile(self.input_size, 128, self._TK_MAX)
        np_ = _round_up(self.output_size, self.tn)
        kp = _round_up(self.input_size, self.tk)

        # Cache the lane-dense, pre-transposed, pre-padded weight & bias in HBM:
        # this transpose/pad no longer runs on every forward call.
        w_t = jnp.asarray(weight, jnp.float32).T                 # (K, N)
        self.w_p = jnp.pad(w_t, ((0, kp - self.input_size),
                                 (0, np_ - self.output_size)))
        self.b_p = jnp.pad(jnp.asarray(bias, jnp.float32).reshape(1, -1),
                           ((0, 0), (0, np_ - self.output_size)))

    def __call__(self, x):
        x = jnp.asarray(x, jnp.float32)
        lead, k_in = x.shape[:-1], x.shape[-1]
        if k_in != self.input_size:
            raise ValueError(f"expected last dim {self.input_size}, got {k_in}")
        x2 = x.reshape(-1, k_in)

        tb = _choose_tile(x2.shape[0], 8, self._TB_MAX)
        out = _linear_pallas_padded(
            x2, self.w_p, self.b_p,
            tb=tb, tn=self.tn, tk=self.tk, n_out=self.output_size,
        )
        # ParamType.mean / sigma / gated / log_prob: all no-ops in the reference.
        return out.reshape(*lead, self.output_size)


if __name__ == "__main__":
    key = jax.random.PRNGKey(0)
    k1, k2, k3 = jax.random.split(key, 3)

    # Small shapes consistent with the module: ParamProvider(param_type, 32, 16)
    batch = 4
    input_size = 32
    output_size = 16

    x = jax.random.normal(k1, (batch, input_size), dtype=jnp.float32)
    # Deterministic stand-in for nn.Linear's default U(-1/sqrt(in), 1/sqrt(in)) init.
    bound = 1.0 / (input_size ** 0.5)
    weight = jax.random.uniform(
        k2, (output_size, input_size), jnp.float32, -bound, bound
    )
    bias = jax.random.uniform(k3, (output_size,), jnp.float32, -bound, bound)

    provider = ParamProviderPallas("mean", weight, bias)

    y = provider(x)
    jax.block_until_ready(y)
    y_ref = x @ weight.T + bias
    assert jnp.allclose(y, y_ref, atol=1e-5, rtol=1e-5), (y, y_ref)

    # Second call at a non-multiple-of-8 batch exercises the adaptive padding
    # path (pad + slice fused under jit) with the cached weight.
    x2 = jax.random.normal(k1, (10, input_size), dtype=jnp.float32)
    y2 = provider(x2)
    jax.block_until_ready(y2)
    y2_ref = x2 @ weight.T + bias
    assert jnp.allclose(y2, y2_ref, atol=1e-5, rtol=1e-5), (y2, y2_ref)

    print("KERNEL_OK")
</pallas_src>

<mosaic_0001>
module attributes {stable_mosaic.version = 11 : i64} {
  func.func @_linear_kernel(%arg0: i32, %arg1: i32, %arg2: i32, %arg3: memref<8x128xf32, #tpu.memory_space<vmem>>, %arg4: memref<128x128xf32, #tpu.memory_space<vmem>>, %arg5: memref<1x128xf32, #tpu.memory_space<vmem>>, %arg6: memref<8x128xf32, #tpu.memory_space<vmem>>) attributes {dimension_semantics = [#tpu.dimension_semantics<parallel>, #tpu.dimension_semantics<parallel>, #tpu.dimension_semantics<arbitrary>], iteration_bounds = array<i64: 1, 1, 1>, scalar_prefetch = 0 : i64, scratch_operands = 0 : i64, tpu.core_type = #tpu.core_type<tc>, window_params = [{transform_indices = @transform_0, window_bounds = array<i64: 8, 128>}, {transform_indices = @transform_1, window_bounds = array<i64: 128, 128>}, {transform_indices = @transform_2, window_bounds = array<i64: 1, 128>}, {transform_indices = @transform_3, window_bounds = array<i64: 8, 128>}]} {
    %c0_i32 = arith.constant 0 : i32
    %0 = arith.cmpi eq, %arg2, %c0_i32 : i32
    %1 = arith.extui %0 : i1 to i32
    %c0_i32_0 = arith.constant 0 : i32
    %2 = arith.cmpi ne, %1, %c0_i32_0 : i32
    scf.if %2 {
      %c0_8 = arith.constant 0 : index
      %c0_9 = arith.constant 0 : index
      %9 = vector.load %arg5[%c0_8, %c0_9] : memref<1x128xf32, #tpu.memory_space<vmem>>, vector<1x128xf32>
      %10 = vector.shape_cast %9 : vector<1x128xf32> to vector<1x128xf32>
      %11 = vector.broadcast %10 : vector<1x128xf32> to vector<8x128xf32>
      %c0_10 = arith.constant 0 : index
      %c0_11 = arith.constant 0 : index
      %12 = vector.load %arg6[%c0_10, %c0_11] : memref<8x128xf32, #tpu.memory_space<vmem>>, vector<8x128xf32>
      tpu.vector_store %arg6[%c0_10, %c0_11], %11 {strides = array<i32>} : memref<8x128xf32, #tpu.memory_space<vmem>>, vector<8x128xf32>,
    } else {
    }
    %c0 = arith.constant 0 : index
    %c0_1 = arith.constant 0 : index
    %3 = vector.load %arg6[%c0, %c0_1] : memref<8x128xf32, #tpu.memory_space<vmem>>, vector<8x128xf32>
    %c0_2 = arith.constant 0 : index
    %c0_3 = arith.constant 0 : index
    %4 = vector.load %arg3[%c0_2, %c0_3] : memref<8x128xf32, #tpu.memory_space<vmem>>, vector<8x128xf32>
    %c0_4 = arith.constant 0 : index
    %c0_5 = arith.constant 0 : index
    %5 = vector.load %arg4[%c0_4, %c0_5] : memref<128x128xf32, #tpu.memory_space<vmem>>, vector<128x128xf32>
    %cst = arith.constant dense<0.000000e+00> : vector<8x128xf32>
    %6 = tpu.matmul %4, %5, %cst {dimension_numbers = #tpu.dot_dimension_numbers<[1], [0], [0], [1], [0, 0, 1, 1], [], []>} : vector<8x128xf32>, vector<128x128xf32>, vector<8x128xf32> -> vector<8x128xf32>
    %7 = arith.addf %3, %6 : vector<8x128xf32>
    %c0_6 = arith.constant 0 : index
    %c0_7 = arith.constant 0 : index
    %8 = vector.load %arg6[%c0_6, %c0_7] : memref<8x128xf32, #tpu.memory_space<vmem>>, vector<8x128xf32>
    tpu.vector_store %arg6[%c0_6, %c0_7], %7 {strides = array<i32>} : memref<8x128xf32, #tpu.memory_space<vmem>>, vector<8x128xf32>,
    return
  }
  func.func @transform_0(%arg0: i32, %arg1: i32, %arg2: i32) -> (i32, i32) {
    %c0_i32 = arith.constant 0 : i32
    return %arg0, %arg2 : i32, i32
  }
  func.func @transform_1(%arg0: i32, %arg1: i32, %arg2: i32) -> (i32, i32) {
    %c0_i32 = arith.constant 0 : i32
    return %arg2, %arg1 : i32, i32
  }
  func.func @transform_2(%arg0: i32, %arg1: i32, %arg2: i32) -> (i32, i32) {
    %c0_i32 = arith.constant 0 : i32
    %c0_i32_0 = arith.constant 0 : i32
    return %c0_i32, %arg1 : i32, i32
  }
  func.func @transform_3(%arg0: i32, %arg1: i32, %arg2: i32) -> (i32, i32) {
    %c0_i32 = arith.constant 0 : i32
    return %arg0, %arg1 : i32, i32
  }
}

</mosaic_0001>

<llo_original>
// kernel: _linear_pallas_padded.1
$region0: #{_linear_pallas_padded.1}
  #allocation0 [shape = 'u32[]', space=smem, size = 0x4, offset = 0x4, fixed_abs, tag = 'smem constant byte address 0x4 - core index']
  #allocation1 [shape = 'u32[144,128]{1,0:T(1,128)}', space=vmem, size = 0x12000, scoped, tag = 'internal scratch']
  %s0 = inlined_call_operand.vmem [shape: f32[8,128], index: 0, kind: input, shape index: {}]
  %s1 = inlined_call_operand.hbm [shape: f32[128,128], index: 1, kind: input, shape index: {}]
  %s2 = inlined_call_operand.vmem [shape: f32[1,128], index: 2, kind: input, shape index: {}]
  %s3 = inlined_call_operand.vmem [shape: f32[8,128], index: 3, kind: output, shape index: {}]
  %s4 = sld [smem:[#allocation0]]
  $region30: #{_linear_pallas_padded.1} parent=0
    _
  %s6 = ssub.s32 1, %s4
  %s7 = scalar_select 0, %s6, %s4
  $region1: #{_linear_pallas_padded.1} parent=0
    #allocation2 [shape = 'u8[65536]{0}', space=vmem, size = 0x10000, scoped, tag = 'input window, operand 1, single buffered']
    #allocation3 [shape = 's32[1]{0}', space=sflag, size = 0x4, scoped, tag = 'scoped memory for _linear_pallas_padded.1']
    %8 = vsyncpa [#allocation3], 0
    // Predicated region
    $region2: #{_linear_pallas_padded.1} parent=1 // pred_check
      _
    $region3: #{_linear_pallas_padded.1} parent=1 // pred_check_branch
      %10 = sbr.rel (0) target = $region5
    $region4: #{_linear_pallas_padded.1} parent=1 // pred_region
      _
    $region5: #{_linear_pallas_padded.1} parent=1 // pred_fallthru
      _
    // Predicated region
    $region6: #{_linear_pallas_padded.1} parent=1 // pred_check
      _
    $region7: #{_linear_pallas_padded.1} parent=1 // pred_check_branch
      %12 = sbr.rel (0) target = $region9
    $region8: #{_linear_pallas_padded.1} parent=1 // pred_region
      %s14 = ssub.s32 2048, 2048
      %15 = vsyncadd [#allocation3], %s14
      %s16 = sshll.u32 [#allocation2], 4
      %s17 = int_to_ptr.vmem [resolvable:$true] %s16
      %22 = dma.hbm_to_vmem [thread:$0]  %s1, 2048, %s17, [#allocation3], 128, 128, 8
    $region9: #{_linear_pallas_padded.1} parent=1 // pred_fallthru
      _
    // Predicated region
    $region10: #{_linear_pallas_padded.1} parent=1 // pred_check
      _
    $region11: #{_linear_pallas_padded.1} parent=1 // pred_check_branch
      %24 = sbr.rel (0) target = $region13
    $region12: #{_linear_pallas_padded.1} parent=1 // pred_region
      _
    $region13: #{_linear_pallas_padded.1} parent=1 // pred_fallthru
      _
    // Predicated region
    $region14: #{_linear_pallas_padded.1} parent=1 // pred_check
      _
    $region15: #{_linear_pallas_padded.1} parent=1 // pred_check_branch
      %26 = sbr.rel (0) target = $region17
    $region16: #{_linear_pallas_padded.1} parent=1 // pred_region
      %27 = dma.done [#allocation3], 2048
    $region17: #{_linear_pallas_padded.1} parent=1 // pred_fallthru
      _
    %p28 = scmp.eq.s32.totalorder 0, 0
    // Predicated region
    $region18: #{_linear_pallas_padded.1} parent=1 // pred_check
      %p29 = pneg %p28
    $region19: #{_linear_pallas_padded.1} parent=1 // pred_check_branch
      %31 = sbr.rel (%p29) target = $region21
    $region20: #{_linear_pallas_padded.1} parent=1 // pred_region
      %v32 = vld [vmem:[%s2] sm:$0x1]
      %v34 = vlaneseq
      %v35 = vshrl.u32 %v34, 7
      %v36 = vsub.s32 0, %v35
      %v37 = vrot.slane %v32, %v36
      %39 = vst [vmem:[%s3] sm:$0xff] %v37
    $region21: #{_linear_pallas_padded.1} parent=1 // pred_fallthru
      _
    %v40 = vld [vmem:[%s3] sm:$0xff]
    %v41 = vld [vmem:[%s0] sm:$0xff]
    %v42 = vld [vmem:[#allocation2] sm:$0xff]
    %v43 = vld [vmem:[#allocation2 + $0x8] sm:$0xff]
    %v44 = vld [vmem:[#allocation2 + $0x10] sm:$0xff]
    %v45 = vld [vmem:[#allocation2 + $0x18] sm:$0xff]
    %v46 = vld [vmem:[#allocation2 + $0x20] sm:$0xff]
    %v47 = vld [vmem:[#allocation2 + $0x28] sm:$0xff]
    %v48 = vld [vmem:[#allocation2 + $0x30] sm:$0xff]
    %v49 = vld [vmem:[#allocation2 + $0x38] sm:$0xff]
    %v50 = vld [vmem:[#allocation2 + $0x40] sm:$0xff]
    %v51 = vld [vmem:[#allocation2 + $0x48] sm:$0xff]
    %v52 = vld [vmem:[#allocation2 + $0x50] sm:$0xff]
    %v53 = vld [vmem:[#allocation2 + $0x58] sm:$0xff]
    %v54 = vld [vmem:[#allocation2 + $0x60] sm:$0xff]
    %v55 = vld [vmem:[#allocation2 + $0x68] sm:$0xff]
    %v56 = vld [vmem:[#allocation2 + $0x70] sm:$0xff]
    %v57 = vld [vmem:[#allocation2 + $0x78] sm:$0xff]
    %58 = vmatprep.subr.mxu0 0.0
    %59 = vmatpush1.msra.mxu0 %v42
    %60 = vmatprep.subr.mxu0 0.0
    %61 = vmatpush1.msra.mxu0 %v43
    %62 = vmatprep.subr.mxu0 0.0
    %63 = vmatpush1.msra.mxu0 %v44
    %64 = vmatprep.subr.mxu0 0.0
    %65 = vmatpush1.msra.mxu0 %v45
    %66 = vmatprep.subr.mxu0 0.0
    %67 = vmatpush1.msra.mxu0 %v46
    %68 = vmatprep.subr.mxu0 0.0
    %69 = vmatpush1.msra.mxu0 %v47
    %70 = vmatprep.subr.mxu0 0.0
    %71 = vmatpush1.msra.mxu0 %v48
    %72 = vmatprep.subr.mxu0 0.0
    %73 = vmatpush1.msra.mxu0 %v49
    %74 = vmatprep.subr.mxu0 0.0
    %75 = vmatpush1.msra.mxu0 %v50
    %76 = vmatprep.subr.mxu0 0.0
    %77 = vmatpush1.msra.mxu0 %v51
    %78 = vmatprep.subr.mxu0 0.0
    %79 = vmatpush1.msra.mxu0 %v52
    %80 = vmatprep.subr.mxu0 0.0
    %81 = vmatpush1.msra.mxu0 %v53
    %82 = vmatprep.subr.mxu0 0.0
    %83 = vmatpush1.msra.mxu0 %v54
    %84 = vmatprep.subr.mxu0 0.0
    %85 = vmatpush1.msra.mxu0 %v55
    %86 = vmatprep.subr.mxu0 0.0
    %87 = vmatpush1.msra.mxu0 %v56
    %88 = vmatprep.subr.mxu0 0.0
    %89 = vmatpush1.msra.mxu0 %v57
    %90 = vmatprep.subr.mxu0 0.0
    %91 = vmatpush1.msra.mxu0 0.0
    %92 = vmatprep.subr.mxu0 0.0
    %93 = vmatpush1.msra.mxu0 0.0
    %94 = vmatprep.subr.mxu0 0.0
    %95 = vmatpush1.msra.mxu0 0.0
    %96 = vmatprep.subr.mxu0 0.0
    %97 = vmatpush1.msra.mxu0 0.0
    %98 = vmatprep.subr.mxu0 0.0
    %99 = vmatpush1.msra.mxu0 0.0
    %100 = vmatprep.subr.mxu0 0.0
    %101 = vmatpush1.msra.mxu0 0.0
    %102 = vmatprep.subr.mxu0 0.0
    %103 = vmatpush1.msra.mxu0 0.0
    %104 = vmatprep.subr.mxu0 0.0
    %105 = vmatpush1.msra.mxu0 0.0
    %106 = vmatprep.subr.mxu0 0.0
    %107 = vmatpush1.msra.mxu0 0.0
    %108 = vmatprep.subr.mxu0 0.0
    %109 = vmatpush1.msra.mxu0 0.0
    %110 = vmatprep.subr.mxu0 0.0
    %111 = vmatpush1.msra.mxu0 0.0
    %112 = vmatprep.subr.mxu0 0.0
    %113 = vmatpush1.msra.mxu0 0.0
    %114 = vmatprep.subr.mxu0 0.0
    %115 = vmatpush1.msra.mxu0 0.0
    %116 = vmatprep.subr.mxu0 0.0
    %117 = vmatpush1.msra.mxu0 0.0
    %118 = vmatprep.subr.mxu0 0.0
    %119 = vmatpush1.msra.mxu0 0.0
    %120 = vmatprep.subr.mxu0 0.0
    %121 = vmatpush1.msra.mxu0 0.0
    %122 = vmatprep.mubr.f32.mxu0 0.0
    %123 = vmatmul.mubr.f32.gmra.mrb[0].mxu0 %v41
    %v124 = vpop.f32.mrb[0].mxu0
    %v125 = vadd.f32 0.0, %v124
    %v126 = vpop.f32.mrb[0].mxu0
    %127 = vdwg.mxu0
    %v128 = vadd.f32 %v40, %v125
    %129 = vst [vmem:[%s3] sm:$0xff] %v128
    // Predicated region
    $region22: #{_linear_pallas_padded.1} parent=1 // pred_check
      _
    $region23: #{_linear_pallas_padded.1} parent=1 // pred_check_branch
      %131 = sbr.rel (0) target = $region25
    $region24: #{_linear_pallas_padded.1} parent=1 // pred_region
      _
    $region25: #{_linear_pallas_padded.1} parent=1 // pred_fallthru
      _
    // Predicated region
    $region26: #{_linear_pallas_padded.1} parent=1 // pred_check
      _
    $region27: #{_linear_pallas_padded.1} parent=1 // pred_check_branch
      %133 = sbr.rel (0) target = $region29
    $region28: #{_linear_pallas_padded.1} parent=1 // pred_region
      _
    $region29: #{_linear_pallas_padded.1} parent=1 // pred_fallthru
      _
    %134 = vsyncpa [#allocation3], 1

</llo_original>
